<compile_context>
chip_gen: v6e
topology: v6e:2x2x1
jax: 0.10.0
libtpu: 0.0.40
codegen_flags: <defaults>
</compile_context>

<pallas_src>
import math

import jax
import jax.numpy as jnp
from jax.experimental import pallas as pl
from jax.experimental.pallas import tpu as pltpu


def sinusoidal_pos_emb_kernel(x_ref, c_ref, out_ref):
    x = x_ref[...]                      # (TB, 1) f32
    w_row = c_ref[0:1, :]               # (1, D_pad)  2*pi*[0, w, w, 0-pad]
    x_mask = c_ref[1:2, :]              # one-hot column 0
    sin_mask = c_ref[2:3, :]            # one-hot sin columns
    cos_mask = c_ref[3:4, :]            # one-hot cos columns

    ang = x * w_row                     # (TB, D_pad) broadcast mul (VPU)
    out_ref[...] = (x * x_mask
                    + jnp.sin(ang) * sin_mask
                    + jnp.cos(ang) * cos_mask)   # full-width lane-dense store


def _round_up(a, m):
    return ((a + m - 1) // m) * m


@jax.jit
def sinusoidal_position_embedding(x, weights):
    B = x.shape[0]
    Dh = weights.shape[0]
    Dout = 2 * Dh + 1
    D_pad = _round_up(Dout, 128)        # lane-dense kernel output width

    # ---- per-column constants, stacked into one (4, D_pad) operand --------
    w_f32 = weights.astype(jnp.float32)
    pad = jnp.zeros((D_pad - Dout,), jnp.float32)
    w_row = (2.0 * math.pi) * jnp.concatenate(
        [jnp.zeros((1,), jnp.float32), w_f32, w_f32, pad])
    x_mask = jnp.zeros((D_pad,), jnp.float32).at[0].set(1.0)
    sin_mask = jnp.zeros((D_pad,), jnp.float32).at[1:1 + Dh].set(1.0)
    cos_mask = jnp.zeros((D_pad,), jnp.float32).at[1 + Dh:1 + 2 * Dh].set(1.0)
    consts = jnp.stack([w_row, x_mask, sin_mask, cos_mask])   # (4, D_pad) f32

    # ---- batch tiling ------------------------------------------------------
    B8 = _round_up(max(B, 1), 8)
    # double-buffered VMEM per row: x block (lane-padded to 128) + out block
    row_bytes = 2 * (128 * 4 + D_pad * 4)
    TB_cap = min(8192, max(8, ((12 << 20) // row_bytes) // 8 * 8))
    if B8 > TB_cap:
        TB = TB_cap                              # biggest tile in VMEM budget
    elif B8 >= 4096:
        TB = _round_up((B8 + 1) // 2, 8)         # >=2 steps -> both v7x TCs
    else:
        TB = B8                                  # single tile, zero step overhead
    B_pad = _round_up(B8, TB)

    x2 = x.reshape(B, 1).astype(jnp.float32)
    if B_pad != B:
        x2 = jnp.pad(x2, ((0, B_pad - B), (0, 0)))

    out = pl.pallas_call(
        sinusoidal_pos_emb_kernel,
        out_shape=jax.ShapeDtypeStruct((B_pad, D_pad), jnp.float32),
        grid_spec=pltpu.PrefetchScalarGridSpec(
            num_scalar_prefetch=0,
            grid=(B_pad // TB,),
            in_specs=[
                pl.BlockSpec((TB, 1), lambda i: (i, 0)),        # x rows
                pl.BlockSpec((4, D_pad), lambda i: (0, 0)),     # constants
            ],
            out_specs=pl.BlockSpec((TB, D_pad), lambda i: (i, 0)),
        ),
        compiler_params=pltpu.CompilerParams(
            dimension_semantics=("parallel",)),
    )(x2, consts)

    # Single fused slice back to the exact module output shape (B, 2*Dh+1).
    return out[:B, :Dout]


def reference_forward(x, weights):
    xc = x[:, None].astype(jnp.float32)
    f = xc * weights[None, :].astype(jnp.float32)
    w = f * (2.0 * math.pi)
    return jnp.concatenate([xc, jnp.sin(w), jnp.cos(w)], axis=-1)


if __name__ == "__main__":
    key = jax.random.PRNGKey(0)

    # main check: dim=32 (module stores dim//2 weights), small batch
    B, dim = 8, 32
    kx, kw, kx2, kw2 = jax.random.split(key, 4)
    x = jax.random.uniform(kx, (B,), jnp.float32)               # timesteps
    weights = jax.random.normal(kw, (dim // 2,), jnp.float32)   # Parameter(randn(dim//2))

    out = jax.block_until_ready(sinusoidal_position_embedding(x, weights))
    ref = reference_forward(x, weights)
    assert out.shape == (B, dim + 1)
    max_err = float(jnp.max(jnp.abs(out - ref)))
    if max_err > 1e-5:
        raise RuntimeError(f"mismatch vs reference: max abs err {max_err}")

    # second quick check: batch not a multiple of 8, tiny odd-ish dim
    B2, dim2 = 20, 6
    x2 = jax.random.uniform(kx2, (B2,), jnp.float32)
    w2 = jax.random.normal(kw2, (dim2 // 2,), jnp.float32)
    out2 = jax.block_until_ready(sinusoidal_position_embedding(x2, w2))
    ref2 = reference_forward(x2, w2)
    assert out2.shape == (B2, dim2 + 1)
    max_err2 = float(jnp.max(jnp.abs(out2 - ref2)))
    if max_err2 > 1e-5:
        raise RuntimeError(f"mismatch vs reference (case 2): max abs err {max_err2}")

    print("KERNEL_OK")
</pallas_src>

<mosaic_0001>
module attributes {stable_mosaic.version = 11 : i64} {
  func.func @sinusoidal_pos_emb_kernel(%arg0: i32, %arg1: memref<8x1xf32, #tpu.memory_space<vmem>>, %arg2: memref<4x128xf32, #tpu.memory_space<vmem>>, %arg3: memref<8x128xf32, #tpu.memory_space<vmem>>) attributes {dimension_semantics = [#tpu.dimension_semantics<parallel>], iteration_bounds = array<i64: 1>, scalar_prefetch = 0 : i64, scratch_operands = 0 : i64, tpu.core_type = #tpu.core_type<tc>, window_params = [{transform_indices = @transform_0, window_bounds = array<i64: 8, 1>}, {pipeline_mode = #tpu.pipeline_mode<synchronous>, transform_indices = @transform_1, window_bounds = array<i64: 4, 128>}, {transform_indices = @transform_2, window_bounds = array<i64: 8, 128>}]} {
    %c0 = arith.constant 0 : index
    %c0_0 = arith.constant 0 : index
    %0 = vector.load %arg1[%c0, %c0_0] : memref<8x1xf32, #tpu.memory_space<vmem>>, vector<8x1xf32>
    %c0_1 = arith.constant 0 : index
    %c0_2 = arith.constant 0 : index
    %1 = vector.load %arg2[%c0_1, %c0_2] : memref<4x128xf32, #tpu.memory_space<vmem>>, vector<1x128xf32>
    %c1 = arith.constant 1 : index
    %c0_3 = arith.constant 0 : index
    %2 = vector.load %arg2[%c1, %c0_3] : memref<4x128xf32, #tpu.memory_space<vmem>>, vector<1x128xf32>
    %c2 = arith.constant 2 : index
    %c0_4 = arith.constant 0 : index
    %3 = vector.load %arg2[%c2, %c0_4] : memref<4x128xf32, #tpu.memory_space<vmem>>, vector<1x128xf32>
    %c3 = arith.constant 3 : index
    %c0_5 = arith.constant 0 : index
    %4 = vector.load %arg2[%c3, %c0_5] : memref<4x128xf32, #tpu.memory_space<vmem>>, vector<1x128xf32>
    %5 = vector.broadcast %0 : vector<8x1xf32> to vector<8x128xf32>
    %6 = vector.broadcast %1 : vector<1x128xf32> to vector<8x128xf32>
    %7 = arith.mulf %5, %6 : vector<8x128xf32>
    %8 = vector.broadcast %0 : vector<8x1xf32> to vector<8x128xf32>
    %9 = vector.broadcast %2 : vector<1x128xf32> to vector<8x128xf32>
    %10 = arith.mulf %8, %9 : vector<8x128xf32>
    %11 = math.sin %7 : vector<8x128xf32>
    %12 = vector.broadcast %3 : vector<1x128xf32> to vector<8x128xf32>
    %13 = arith.mulf %11, %12 : vector<8x128xf32>
    %14 = arith.addf %10, %13 : vector<8x128xf32>
    %15 = math.cos %7 : vector<8x128xf32>
    %16 = vector.broadcast %4 : vector<1x128xf32> to vector<8x128xf32>
    %17 = arith.mulf %15, %16 : vector<8x128xf32>
    %18 = arith.addf %14, %17 : vector<8x128xf32>
    %c0_6 = arith.constant 0 : index
    %c0_7 = arith.constant 0 : index
    %19 = vector.load %arg3[%c0_6, %c0_7] : memref<8x128xf32, #tpu.memory_space<vmem>>, vector<8x128xf32>
    tpu.vector_store %arg3[%c0_6, %c0_7], %18 {strides = array<i32>} : memref<8x128xf32, #tpu.memory_space<vmem>>, vector<8x128xf32>,
    return
  }
  func.func @transform_0(%arg0: i32) -> (i32, i32) {
    %c0_i32 = arith.constant 0 : i32
    %c0_i32_0 = arith.constant 0 : i32
    return %arg0, %c0_i32 : i32, i32
  }
  func.func @transform_1(%arg0: i32) -> (i32, i32) {
    %c0_i32 = arith.constant 0 : i32
    %c0_i32_0 = arith.constant 0 : i32
    %c0_i32_1 = arith.constant 0 : i32
    return %c0_i32, %c0_i32_0 : i32, i32
  }
  func.func @transform_2(%arg0: i32) -> (i32, i32) {
    %c0_i32 = arith.constant 0 : i32
    %c0_i32_0 = arith.constant 0 : i32
    return %arg0, %c0_i32 : i32, i32
  }
}

</mosaic_0001>

<llo_original>
// kernel: sinusoidal_position_embedding.1
$region0: #{sinusoidal_position_embedding.1}
  #allocation0 [shape = 'u32[]', space=smem, size = 0x4, offset = 0x4, fixed_abs, tag = 'smem constant byte address 0x4 - core index']
  #allocation1 [shape = 'u32[144,128]{1,0:T(1,128)}', space=vmem, size = 0x12000, scoped, tag = 'internal scratch']
  %s0 = inlined_call_operand.vmem [shape: f32[8,1], index: 0, kind: input, shape index: {}]
  %s1 = inlined_call_operand.vmem [shape: f32[4,128], index: 1, kind: input, shape index: {}]
  %s2 = inlined_call_operand.hbm [shape: f32[8,128], index: 2, kind: output, shape index: {}]
  %s3 = sld [smem:[#allocation0]]
  $region18: #{sinusoidal_position_embedding.1} parent=0
    _
  %s5 = ssub.s32 1, %s3
  %s6 = scalar_select 0, %s5, %s3
  $region1: #{sinusoidal_position_embedding.1} parent=0
    #allocation2 [shape = 'u8[4096]{0}', space=vmem, size = 0x1000, scoped, tag = 'output window, operand 0, single buffered']
    #allocation3 [shape = 's32[1]{0}', space=sflag, size = 0x4, scoped, tag = 'scoped memory for sinusoidal_position_embedding.1']
    %7 = vsyncpa [#allocation3], 0
    // Predicated region
    $region2: #{sinusoidal_position_embedding.1} parent=1 // pred_check
      _
    $region3: #{sinusoidal_position_embedding.1} parent=1 // pred_check_branch
      %9 = sbr.rel (0) target = $region5
    $region4: #{sinusoidal_position_embedding.1} parent=1 // pred_region
      _
    $region5: #{sinusoidal_position_embedding.1} parent=1 // pred_fallthru
      _
    // Predicated region
    $region6: #{sinusoidal_position_embedding.1} parent=1 // pred_check
      _
    $region7: #{sinusoidal_position_embedding.1} parent=1 // pred_check_branch
      %11 = sbr.rel (0) target = $region9
    $region8: #{sinusoidal_position_embedding.1} parent=1 // pred_region
      _
    $region9: #{sinusoidal_position_embedding.1} parent=1 // pred_fallthru
      _
    %v12 = vld [vmem:[%s0] sm:$0xff]
    %v13 = vld [vmem:[%s1] sm:$0x1]
    %v14 = vld [vmem:[%s1 + $0x1] sm:$0x1]
    %v15 = vld [vmem:[%s1 + $0x2] sm:$0x1]
    %v16 = vld [vmem:[%s1 + $0x3] sm:$0x1]
    %18 = vset.pattern.permute.xlu0 0
    %19 = vperm.xlu0 %18, %v12
    %v20 = vpop.permute.xlu0 %19
    %v22 = vlaneseq
    %v23 = vshrl.u32 %v22, 7
    %v24 = vsub.s32 0, %v23
    %v25 = vrot.slane %v13, %v24
    %v26 = vmul.f32 %v20, %v25
    %v27 = vlaneseq
    %v28 = vshrl.u32 %v27, 7
    %v29 = vsub.s32 0, %v28
    %v30 = vrot.slane %v14, %v29
    %v31 = vmul.f32 %v20, %v30
    %v32 = vand.u32 2147483647, %v26
    %vm33 = vcmp.le.f32.partialorder %v32, 0.7853982
    %vm34 = vcmp.lt.s32.totalorder %v26, 0
    %v35 = vand.u32 %v26, 2139095040
    %v36 = vshrl.u32 %v35, 23
    %v37 = vsub.s32 %v36, 127
    %v38 = vand.u32 2147483647, %v26
    %v39 = vand.u32 %v38, 8388607
    %v40 = vor.u32 %v39, 8388608
    %v41 = vsub.s32 0, %v40
    %v42 = vadd.s32 %v37, 1
    %vm43 = vcmp.gt.s32.totalorder %v42, 0
    %v44 = vsel %vm43, %v42, 0
    %v45 = vshrl.u32 %v44, 5
    %v46 = vand.u32 %v44, 31
    %v47 = vsub.s32 32, %v46
    %v48 = vshrl.u32 683565275, %v47
    %v49 = vshll.u32 683565275, %v46
    %v50 = vshrl.u32 2475754826, %v47
    %v51 = vor.u32 %v49, %v50
    %v52 = vshll.u32 2475754826, %v46
    %v53 = vshrl.u32 2131351028, %v47
    %v54 = vor.u32 %v52, %v53
    %v55 = vshll.u32 2131351028, %v46
    %v56 = vshrl.u32 2102212464, %v47
    %v57 = vor.u32 %v55, %v56
    %v58 = vshll.u32 2102212464, %v46
    %v59 = vshrl.u32 920167782, %v47
    %v60 = vor.u32 %v58, %v59
    %v61 = vshll.u32 920167782, %v46
    %v62 = vshrl.u32 1326507024, %v47
    %v63 = vor.u32 %v61, %v62
    %vm64 = vcmp.lt.s32.totalorder %v45, 1
    %vm65 = vcmp.lt.s32.totalorder %v45, 2
    %vm66 = vcmp.lt.s32.totalorder %v45, 3
    %vm67 = vcmp.lt.s32.totalorder %v45, 4
    %v68 = vsel %vm64, %v48, %v51
    %v69 = vsel %vm67, %v57, 2102212464
    %v70 = vsel %vm66, %v54, %v69
    %v71 = vsel %vm65, %v68, %v70
    %v72 = vsel %vm64, %v51, %v54
    %v73 = vsel %vm67, %v60, 920167782
    %v74 = vsel %vm66, %v57, %v73
    %v75 = vsel %vm65, %v72, %v74
    %v76 = vsel %vm64, %v54, %v57
    %v77 = vsel %vm67, %v63, 1326507024
    %v78 = vsel %vm66, %v60, %v77
    %v79 = vsel %vm65, %v76, %v78
    %v80 = vshll.u32 %v40, 8
    %v81 = vmul.u32.u64.compose %v80, %v79
    %v82 = vextract.low.u32 %v81
    %v83 = vextract.high.u32 %v81
    %v84 = vmul.u32.u64.compose %v80, %v75
    %v85 = vextract.low.u32 %v84
    %v86 = vextract.high.u32 %v84
    %v87 = vmul.u32 %v80, %v71
    %v88 = vadd.s32 %v83, %v85
    %vm89 = vc.u32 %v83, %v85
    %v90 = vadd.s32 %v86, 1
    %v91 = vsel %vm89, %v90, %v86
    %v92 = vadd.s32 %v87, %v91
    %v93 = vadd.s32 %v92, 536870912
    %v94 = vshrl.u32 %v93, 30
    %v95 = vshll.u32 %v94, 30
    %v96 = vsub.s32 %v92, %v95
    %vm97 = vcmp.lt.s32.totalorder %v96, 0
    %v98 = vsub.s32 0, %v96
    %v99 = vsel %vm97, %v98, %v96
    %v100 = vclz %v99
    %v101 = vsub.s32 %v100, 2
    %vm102 = vcmp.gt.s32.totalorder 0, %v101
    %v103 = vsel %vm102, 0, %v101
    %v104 = vsub.s32 32, %v103
    %v105 = vshll.u32 %v96, %v103
    %v106 = vshrl.u32 %v88, %v104
    %v107 = vor.u32 %v105, %v106
    %v108 = vsub.s32 4294967266, %v103
    %v109 = vadd.s32 %v108, 127
    %v110 = vshll.u32 %v109, 23
    %v111 = vor.u32 4788187, %v110
    %v112 = vand.u32 2147483647, %v111
    %v114 = vcvt.s32.f32 %v107
    %v115 = vmul.f32 %v114, %v112
    %v116 = vxor.u32 %v115, 2147483648
    %v117 = vsel %vm34, %v116, %v115
    %v118 = vsub.s32 4, %v94
    %v119 = vsel %vm34, %v118, %v94
    %v120 = vsel %vm33, %v26, %v117
    %v121 = vsel %vm33, 0, %v119
    %v122 = vcosq.f32.pop %v120
    %v123 = vsinq.f32.pop %v120
    %vm124 = vweird.f32 %v26
    %v125 = vadd.s32 %v121, 3
    %v126 = vand.u32 %v125, 3
    %vm127 = vcmp.lt.s32.totalorder %v126, 2
    %vm128 = vcmp.eq.s32.totalorder %v126, 0
    %v129 = vxor.u32 %v123, 2147483648
    %v130 = vsel %vm128, %v122, %v129
    %vm131 = vcmp.eq.s32.totalorder %v126, 2
    %v132 = vxor.u32 %v122, 2147483648
    %v133 = vsel %vm131, %v132, %v123
    %v134 = vsel %vm127, %v130, %v133
    %v135 = vsel %vm124, nan, %v134
    %v136 = vlaneseq
    %v137 = vshrl.u32 %v136, 7
    %v138 = vsub.s32 0, %v137
    %v139 = vrot.slane %v15, %v138
    %v140 = vmul.f32 %v135, %v139
    %v141 = vadd.f32 %v31, %v140
    %v142 = vand.u32 2147483647, %v26
    %vm143 = vcmp.le.f32.partialorder %v142, 0.7853982
    %vm144 = vcmp.lt.s32.totalorder %v26, 0
    %v145 = vand.u32 %v26, 2139095040
    %v146 = vshrl.u32 %v145, 23
    %v147 = vsub.s32 %v146, 127
    %v148 = vand.u32 2147483647, %v26
    %v149 = vand.u32 %v148, 8388607
    %v150 = vor.u32 %v149, 8388608
    %v151 = vsub.s32 0, %v150
    %v152 = vadd.s32 %v147, 1
    %vm153 = vcmp.gt.s32.totalorder %v152, 0
    %v154 = vsel %vm153, %v152, 0
    %v155 = vshrl.u32 %v154, 5
    %v156 = vand.u32 %v154, 31
    %v157 = vsub.s32 32, %v156
    %v158 = vshrl.u32 683565275, %v157
    %v159 = vshll.u32 683565275, %v156
    %v160 = vshrl.u32 2475754826, %v157
    %v161 = vor.u32 %v159, %v160
    %v162 = vshll.u32 2475754826, %v156
    %v163 = vshrl.u32 2131351028, %v157
    %v164 = vor.u32 %v162, %v163
    %v165 = vshll.u32 2131351028, %v156
    %v166 = vshrl.u32 2102212464, %v157
    %v167 = vor.u32 %v165, %v166
    %v168 = vshll.u32 2102212464, %v156
    %v169 = vshrl.u32 920167782, %v157
    %v170 = vor.u32 %v168, %v169
    %v171 = vshll.u32 920167782, %v156
    %v172 = vshrl.u32 1326507024, %v157
    %v173 = vor.u32 %v171, %v172
    %vm174 = vcmp.lt.s32.totalorder %v155, 1
    %vm175 = vcmp.lt.s32.totalorder %v155, 2
    %vm176 = vcmp.lt.s32.totalorder %v155, 3
    %vm177 = vcmp.lt.s32.totalorder %v155, 4
    %v178 = vsel %vm174, %v158, %v161
    %v179 = vsel %vm177, %v167, 2102212464
    %v180 = vsel %vm176, %v164, %v179
    %v181 = vsel %vm175, %v178, %v180
    %v182 = vsel %vm174, %v161, %v164
    %v183 = vsel %vm177, %v170, 920167782
    %v184 = vsel %vm176, %v167, %v183
    %v185 = vsel %vm175, %v182, %v184
    %v186 = vsel %vm174, %v164, %v167
    %v187 = vsel %vm177, %v173, 1326507024
    %v188 = vsel %vm176, %v170, %v187
    %v189 = vsel %vm175, %v186, %v188
    %v190 = vshll.u32 %v150, 8
    %v191 = vmul.u32.u64.compose %v190, %v189
    %v192 = vextract.low.u32 %v191
    %v193 = vextract.high.u32 %v191
    %v194 = vmul.u32.u64.compose %v190, %v185
    %v195 = vextract.low.u32 %v194
    %v196 = vextract.high.u32 %v194
    %v197 = vmul.u32 %v190, %v181
    %v198 = vadd.s32 %v193, %v195
    %vm199 = vc.u32 %v193, %v195
    %v200 = vadd.s32 %v196, 1
    %v201 = vsel %vm199, %v200, %v196
    %v202 = vadd.s32 %v197, %v201
    %v203 = vadd.s32 %v202, 536870912
    %v204 = vshrl.u32 %v203, 30
    %v205 = vshll.u32 %v204, 30
    %v206 = vsub.s32 %v202, %v205
    %vm207 = vcmp.lt.s32.totalorder %v206, 0
    %v208 = vsub.s32 0, %v206
    %v209 = vsel %vm207, %v208, %v206
    %v210 = vclz %v209
    %v211 = vsub.s32 %v210, 2
    %vm212 = vcmp.gt.s32.totalorder 0, %v211
    %v213 = vsel %vm212, 0, %v211
    %v214 = vsub.s32 32, %v213
    %v215 = vshll.u32 %v206, %v213
    %v216 = vshrl.u32 %v198, %v214
    %v217 = vor.u32 %v215, %v216
    %v218 = vsub.s32 4294967266, %v213
    %v219 = vadd.s32 %v218, 127
    %v220 = vshll.u32 %v219, 23
    %v221 = vor.u32 4788187, %v220
    %v222 = vand.u32 2147483647, %v221
    %v224 = vcvt.s32.f32 %v217
    %v225 = vmul.f32 %v224, %v222
    %v226 = vxor.u32 %v225, 2147483648
    %v227 = vsel %vm144, %v226, %v225
    %v228 = vsub.s32 4, %v204
    %v229 = vsel %vm144, %v228, %v204
    %v230 = vsel %vm143, %v26, %v227
    %v231 = vsel %vm143, 0, %v229
    %v232 = vcosq.f32.pop %v230
    %v233 = vsinq.f32.pop %v230
    %vm234 = vweird.f32 %v26
    %v235 = vand.u32 %v231, 3
    %vm236 = vcmp.lt.s32.totalorder %v235, 2
    %vm237 = vcmp.eq.s32.totalorder %v235, 0
    %v238 = vxor.u32 %v233, 2147483648
    %v239 = vsel %vm237, %v232, %v238
    %vm240 = vcmp.eq.s32.totalorder %v235, 2
    %v241 = vxor.u32 %v232, 2147483648
    %v242 = vsel %vm240, %v241, %v233
    %v243 = vsel %vm236, %v239, %v242
    %v244 = vsel %vm234, nan, %v243
    %v245 = vlaneseq
    %v246 = vshrl.u32 %v245, 7
    %v247 = vsub.s32 0, %v246
    %v248 = vrot.slane %v16, %v247
    %v249 = vmul.f32 %v244, %v248
    %v250 = vadd.f32 %v141, %v249
    %251 = vst [vmem:[#allocation2] sm:$0xff] %v250
    // Predicated region
    $region10: #{sinusoidal_position_embedding.1} parent=1 // pred_check
      _
    $region11: #{sinusoidal_position_embedding.1} parent=1 // pred_check_branch
      %253 = sbr.rel (0) target = $region13
    $region12: #{sinusoidal_position_embedding.1} parent=1 // pred_region
      %s255 = ssub.s32 128, 128
      %256 = vsyncadd [#allocation3], %s255
      %s258 = sshll.u32 [#allocation2], 4
      %s259 = int_to_ptr.vmem [resolvable:$true] %s258
      %261 = dma.vmem_to_hbm [thread:$0]  %s259, 128, %s2, [#allocation3]
    $region13: #{sinusoidal_position_embedding.1} parent=1 // pred_fallthru
      _
    // Predicated region
    $region14: #{sinusoidal_position_embedding.1} parent=1 // pred_check
      _
    $region15: #{sinusoidal_position_embedding.1} parent=1 // pred_check_branch
      %263 = sbr.rel (0) target = $region17
    $region16: #{sinusoidal_position_embedding.1} parent=1 // pred_region
      %264 = dma.done [#allocation3], 128
    $region17: #{sinusoidal_position_embedding.1} parent=1 // pred_fallthru
      _
    %265 = vsyncpa [#allocation3], 1

</llo_original>
